<compile_context>
chip_gen: v6e
topology: v6e:2x2x1
jax: 0.10.0
libtpu: 0.0.40
codegen_flags: <defaults>
</compile_context>

<pallas_src>
import functools

import jax
import jax.numpy as jnp
from jax.experimental import pallas as pl
from jax.experimental.pallas import tpu as pltpu


def _rce_kernel(pred_ref, labels_ref, out_ref, *, n_rows: int):
    i = pl.program_id(0)
    tn = pred_ref.shape[0]

    x = pred_ref[...]                                   # (TN, C), native dtype
    labels = labels_ref[...]                            # (TN, 1) int32

    # Numerically stable softmax pieces.  Max on the native dtype (exact);
    # the f32 upcast is fused into the exp argument, so no f32 tile copy is
    # live across the max reduce.
    m = jnp.max(x, axis=1, keepdims=True)
    e = jnp.exp(x.astype(jnp.float32) - m.astype(jnp.float32))   # (TN, C) f32
    denom = jnp.sum(e, axis=1, keepdims=True)                     # (TN, 1)

    # clip(softmax, 1e-7, 1.0) == max(e, 1e-7*denom) / denom  (upper clamp is
    # a no-op).  log(clamped one-hot) is 0 on the true class and log(1e-4)
    # elsewhere, hence:
    #   rce_i = -log(1e-4) * sum_{c != y_i} max(e_ic, 1e-7*denom_i) / denom_i
    q = jnp.maximum(e, jnp.float32(1e-7) * denom)
    col = jax.lax.broadcasted_iota(jnp.int32, q.shape, 1)
    s_other = jnp.sum(jnp.where(col == labels, jnp.float32(0.0), q),
                      axis=1, keepdims=True)                      # (TN, 1)

    neg_log_eps = -jnp.log(jnp.float32(1e-4))                     # trace-time const
    rce = neg_log_eps * s_other * pl.reciprocal(denom, approx=False)  # (TN, 1)

    # Zero rows past the true batch size (padded tail of the last tile), then
    # reduce to a single per-tile partial and store it lane-dense.
    row = jax.lax.broadcasted_iota(jnp.int32, rce.shape, 0) + i * tn
    tile_sum = jnp.sum(jnp.where(row < n_rows, rce, jnp.float32(0.0)))
    out_ref[...] = jnp.broadcast_to(tile_sum, out_ref.shape).astype(jnp.float32)


def _round_up(x: int, m: int) -> int:
    return ((x + m - 1) // m) * m


def reverse_cross_entropy(pred, labels, *, num_classes: int, scale: float = 1.0,
                          block_rows: int | None = None):
    """pred: (N, num_classes) float, labels: (N,) int -> scalar float32 loss."""
    n, c = pred.shape
    assert c == num_classes
    itemsize = jnp.dtype(pred.dtype).itemsize
    row_align = 16 if itemsize < 4 else 8                 # bf16 min tile is (16,128)

    if block_rows is None:
        # ~2 MiB per input pipeline buffer.  With double buffering plus ~3 live
        # full-width f32 intermediates this stays well inside the explicit
        # 32 MiB scoped-VMEM limit on every generation (v5e/v6e/v7x), while
        # being large enough (>= 1-2 MiB) to sit at ~85% of HBM roofline.
        target_bytes = 2 * 1024 * 1024
        tn = (target_bytes // max(1, c * itemsize)) // row_align * row_align
        tn = max(row_align, tn)
        tn = min(tn, 32768, _round_up(n, row_align))
    else:
        tn = _round_up(block_rows, row_align)

    num_tiles = pl.cdiv(n, tn)
    labels2d = labels.reshape(n, 1).astype(jnp.int32)

    partials = pl.pallas_call(
        functools.partial(_rce_kernel, n_rows=n),
        out_shape=jax.ShapeDtypeStruct((num_tiles, 1, 128), jnp.float32),
        grid=(num_tiles,),
        in_specs=[
            pl.BlockSpec((tn, c), lambda i: (i, 0)),       # pred tile (native dtype)
            pl.BlockSpec((tn, 1), lambda i: (i, 0)),       # labels column
        ],
        out_specs=pl.BlockSpec((1, 1, 128), lambda i: (i, 0, 0)),  # per-tile partial
        compiler_params=pltpu.CompilerParams(
            dimension_semantics=("parallel",),
            vmem_limit_bytes=32 * 1024 * 1024),
        cost_estimate=pl.CostEstimate(
            flops=6 * n * c,
            transcendentals=n * c,
            bytes_accessed=n * c * itemsize + n * 4 + num_tiles * 128 * 4),
    )(pred, labels2d)

    # Tiny epilogue: mean over the true batch size and scale.
    total = jnp.sum(partials[:, 0, 0])
    return (jnp.float32(scale) * total / jnp.float32(n)).astype(jnp.float32)


def _reference(pred, labels, num_classes, scale):
    p_ref = jnp.clip(jax.nn.softmax(pred.astype(jnp.float32), axis=1), 1e-07, 1.0)
    oh_ref = jnp.clip(jax.nn.one_hot(labels, num_classes, dtype=jnp.float32), 1e-4, 1.0)
    rce_ref = -jnp.sum(p_ref * jnp.log(oh_ref), axis=1)
    return scale * jnp.mean(rce_ref)


if __name__ == "__main__":
    key = jax.random.PRNGKey(0)
    k1, k2, k3, k4 = jax.random.split(key, 4)

    # Small synthetic shapes consistent with the module: (batch, num_classes).
    N, C = 8, 16
    pred = jax.random.normal(k1, (N, C), dtype=jnp.float32)
    labels = jax.random.randint(k2, (N,), 0, C, dtype=jnp.int32)

    loss = reverse_cross_entropy(pred, labels, num_classes=C, scale=1.0)
    loss = jax.block_until_ready(loss)
    loss_ref = _reference(pred, labels, C, 1.0)
    assert jnp.allclose(loss, loss_ref, rtol=1e-5, atol=1e-5), (loss, loss_ref)

    # Second check: batch not a multiple of the tile -> exercises multi-tile
    # grid, per-tile scalar partials and padded-row masking
    # (block_rows=8, N=20 -> 3 tiles, 4 pad rows).
    N2 = 20
    pred2 = jax.random.normal(k3, (N2, C), dtype=jnp.float32)
    labels2 = jax.random.randint(k4, (N2,), 0, C, dtype=jnp.int32)
    loss2 = reverse_cross_entropy(pred2, labels2, num_classes=C, scale=0.5,
                                  block_rows=8)
    loss2 = jax.block_until_ready(loss2)
    loss2_ref = _reference(pred2, labels2, C, 0.5)
    assert jnp.allclose(loss2, loss2_ref, rtol=1e-5, atol=1e-5), (loss2, loss2_ref)

    print("KERNEL_OK")
</pallas_src>

<mosaic_0001>
module attributes {stable_mosaic.version = 11 : i64} {
  func.func @_rce_kernel(%arg0: i32, %arg1: memref<8x16xf32, #tpu.memory_space<vmem>>, %arg2: memref<8x1xi32, #tpu.memory_space<vmem>>, %arg3: memref<1x1x128xf32, #tpu.memory_space<vmem>>) attributes {dimension_semantics = [#tpu.dimension_semantics<parallel>], iteration_bounds = array<i64: 1>, scalar_prefetch = 0 : i64, scratch_operands = 0 : i64, tpu.core_type = #tpu.core_type<tc>, window_params = [{transform_indices = @transform_0, window_bounds = array<i64: 8, 16>}, {transform_indices = @transform_1, window_bounds = array<i64: 8, 1>}, {transform_indices = @transform_2, window_bounds = array<i64: 1, 1, 128>}]} {
    %c0 = arith.constant 0 : index
    %c0_0 = arith.constant 0 : index
    %0 = vector.load %arg1[%c0, %c0_0] : memref<8x16xf32, #tpu.memory_space<vmem>>, vector<8x16xf32>
    %c0_1 = arith.constant 0 : index
    %c0_2 = arith.constant 0 : index
    %1 = vector.load %arg2[%c0_1, %c0_2] : memref<8x1xi32, #tpu.memory_space<vmem>>, vector<8x1xi32>
    %cst = arith.constant dense<0xFF800000> : vector<8xf32>
    %2 = vector.multi_reduction <maximumf>, %0, %cst [1] : vector<8x16xf32> to vector<8xf32>
    %3 = vector.shape_cast %2 : vector<8xf32> to vector<8x1xf32>
    %4 = vector.broadcast %3 : vector<8x1xf32> to vector<8x16xf32>
    %5 = arith.subf %0, %4 : vector<8x16xf32>
    %6 = math.exp %5 : vector<8x16xf32>
    %cst_3 = arith.constant dense<0.000000e+00> : vector<8xf32>
    %7 = vector.multi_reduction <add>, %6, %cst_3 [1] : vector<8x16xf32> to vector<8xf32>
    %8 = vector.shape_cast %7 : vector<8xf32> to vector<8x1xf32>
    %cst_4 = arith.constant 1.000000e-07 : f32
    %9 = vector.broadcast %cst_4 : f32 to vector<8x1xf32>
    %10 = arith.mulf %9, %8 : vector<8x1xf32>
    %11 = vector.broadcast %10 : vector<8x1xf32> to vector<8x16xf32>
    %12 = arith.maximumf %6, %11 : vector<8x16xf32>
    %13 = tpu.iota {dimensions = array<i32: 1>} : vector<8x16xi32>
    %14 = vector.broadcast %1 : vector<8x1xi32> to vector<8x16xi32>
    %15 = arith.cmpi eq, %13, %14 : vector<8x16xi32>
    %cst_5 = arith.constant 0.000000e+00 : f32
    %16 = vector.broadcast %cst_5 : f32 to vector<8x16xf32>
    %17 = arith.select %15, %16, %12 : vector<8x16xi1>, vector<8x16xf32>
    %cst_6 = arith.constant dense<0.000000e+00> : vector<8xf32>
    %18 = vector.multi_reduction <add>, %17, %cst_6 [1] : vector<8x16xf32> to vector<8xf32>
    %19 = vector.shape_cast %18 : vector<8xf32> to vector<8x1xf32>
    %cst_7 = arith.constant 9.99999974E-5 : f32
    %20 = math.log %cst_7 : f32
    %cst_8 = arith.constant 0.000000e+00 : f32
    %21 = arith.subf %cst_8, %20 : f32
    %22 = vector.broadcast %21 : f32 to vector<8x1xf32>
    %23 = arith.mulf %22, %19 : vector<8x1xf32>
    %24 = tpu.reciprocal %8 : vector<8x1xf32> -> vector<8x1xf32>
    %25 = arith.mulf %23, %24 : vector<8x1xf32>
    %26 = tpu.iota {dimensions = array<i32: 0>} : vector<8x1xi32>
    %c8_i32 = arith.constant 8 : i32
    %27 = arith.muli %arg0, %c8_i32 : i32
    %28 = vector.broadcast %27 : i32 to vector<8x1xi32>
    %29 = arith.addi %26, %28 : vector<8x1xi32>
    %c8_i32_9 = arith.constant 8 : i32
    %30 = vector.broadcast %c8_i32_9 : i32 to vector<8x1xi32>
    %31 = arith.cmpi slt, %29, %30 : vector<8x1xi32>
    %cst_10 = arith.constant 0.000000e+00 : f32
    %32 = vector.broadcast %cst_10 : f32 to vector<8x1xf32>
    %33 = arith.select %31, %25, %32 : vector<8x1xi1>, vector<8x1xf32>
    %34 = vector.shape_cast %33 : vector<8x1xf32> to vector<1x8x1xf32>
    %cst_11 = arith.constant dense<0.000000e+00> : vector<1xf32>
    %35 = vector.multi_reduction <add>, %34, %cst_11 [1, 2] : vector<1x8x1xf32> to vector<1xf32>
    %36 = vector.shape_cast %35 : vector<1xf32> to vector<1x1x1xf32>
    %37 = vector.extract %36[0, 0, 0] : f32 from vector<1x1x1xf32>
    %38 = vector.broadcast %37 : f32 to vector<1x1x128xf32>
    %c0_12 = arith.constant 0 : index
    %c0_13 = arith.constant 0 : index
    %c0_14 = arith.constant 0 : index
    %39 = vector.load %arg3[%c0_12, %c0_13, %c0_14] : memref<1x1x128xf32, #tpu.memory_space<vmem>>, vector<1x1x128xf32>
    tpu.vector_store %arg3[%c0_12, %c0_13, %c0_14], %38 {strides = array<i32>} : memref<1x1x128xf32, #tpu.memory_space<vmem>>, vector<1x1x128xf32>,
    return
  }
  func.func @transform_0(%arg0: i32) -> (i32, i32) {
    %c0_i32 = arith.constant 0 : i32
    %c0_i32_0 = arith.constant 0 : i32
    return %arg0, %c0_i32 : i32, i32
  }
  func.func @transform_1(%arg0: i32) -> (i32, i32) {
    %c0_i32 = arith.constant 0 : i32
    %c0_i32_0 = arith.constant 0 : i32
    return %arg0, %c0_i32 : i32, i32
  }
  func.func @transform_2(%arg0: i32) -> (i32, i32, i32) {
    %c0_i32 = arith.constant 0 : i32
    %c0_i32_0 = arith.constant 0 : i32
    %c0_i32_1 = arith.constant 0 : i32
    return %arg0, %c0_i32, %c0_i32_0 : i32, i32, i32
  }
}

</mosaic_0001>

<llo_original>
// kernel: tpu_custom_call.1
$region0: #{tpu_custom_call.1}
  #allocation0 [shape = 'u32[]', space=smem, size = 0x4, offset = 0x4, fixed_abs, tag = 'smem constant byte address 0x4 - core index']
  #allocation1 [shape = 'u32[144,128]{1,0:T(1,128)}', space=vmem, size = 0x12000, scoped, tag = 'internal scratch']
  %s0 = inlined_call_operand.vmem [shape: f32[8,16], index: 0, kind: input, shape index: {}]
  %s1 = inlined_call_operand.vmem [shape: s32[8,1], index: 1, kind: input, shape index: {}]
  %s2 = inlined_call_operand.hbm [shape: f32[1,1,128], index: 2, kind: output, shape index: {}]
  %s3 = sld [smem:[#allocation0]]
  $region18: #{tpu_custom_call.1} parent=0
    _
  %s5 = ssub.s32 1, %s3
  %s6 = scalar_select 0, %s5, %s3
  $region1: #{tpu_custom_call.1} parent=0
    #allocation2 [shape = 'u8[512]{0}', space=vmem, size = 0x400, scoped, tag = 'output window, operand 0, single buffered']
    #allocation3 [shape = 's32[1]{0}', space=sflag, size = 0x4, scoped, tag = 'scoped memory for tpu_custom_call.1']
    %7 = vsyncpa [#allocation3], 0
    // Predicated region
    $region2: #{tpu_custom_call.1} parent=1 // pred_check
      _
    $region3: #{tpu_custom_call.1} parent=1 // pred_check_branch
      %9 = sbr.rel (0) target = $region5
    $region4: #{tpu_custom_call.1} parent=1 // pred_region
      _
    $region5: #{tpu_custom_call.1} parent=1 // pred_fallthru
      _
    // Predicated region
    $region6: #{tpu_custom_call.1} parent=1 // pred_check
      _
    $region7: #{tpu_custom_call.1} parent=1 // pred_check_branch
      %11 = sbr.rel (0) target = $region9
    $region8: #{tpu_custom_call.1} parent=1 // pred_region
      _
    $region9: #{tpu_custom_call.1} parent=1 // pred_fallthru
      _
    %v12 = vld [vmem:[%s0] sm:$0xff]
    %v13 = vld [vmem:[%s1] sm:$0xff]
    %vm14 = vcmask 130048
    %v15 = vsel %vm14, %v12, -inf
    %16 = vmax.xlane.f32.xlu0 %v15
    %v17 = vpop.xlane.xlu0 %16
    %v18 = vsub.f32 %v12, %v17
    %v19 = vmul.f32 %v18, 1.442695
    %v20 = vpow.pop %v19
    %v21 = vsel %vm14, %v20, 0.0
    %22 = vadd.xlane.f32.xlu0 %v21
    %v23 = vpop.xlane.xlu0 %22
    %v24 = vmul.f32 %v23, 1e-07
    %v25 = vmax.f32 %v20, %v24
    %v26 = vlaneseq
    %v27 = vand.u32 %v26, 127
    %28 = vset.pattern.permute.xlu0 0
    %29 = vperm.xlu0 %28, %v13
    %v30 = vpop.permute.xlu0 %29
    %vm31 = vcmp.eq.s32.totalorder %v27, %v30
    %v32 = vsel %vm31, 0.0, %v25
    %v33 = vsel %vm14, %v32, 0.0
    %34 = vadd.xlane.f32.xlu0 %v33
    %v35 = vpop.xlane.xlu0 %34
    %v36 = vmul.f32 %v35, 9.2103405
    %v37 = vrcp.pop %v23
    %v38 = vmul.f32 %v36, %v37
    %v39 = vlaneseq
    %v40 = vshrl.u32 %v39, 7
    %s41 = smul.u32 0, 8
    %v42 = vstv %s41
    %v43 = vadd.s32 %v40, %v42
    %vm44 = vcmp.lt.s32.totalorder %v43, 8
    %v45 = vsel %vm44, %v38, 0.0
    %vm46 = vcmask 7168
    %v47 = vsel %vm46, %v45, 0.0
    %48 = vadd.xlane.f32.xlu0 %v47
    %v49 = vpop.xlane.xlu0 %48
    %v50 = vrot.slane %v49, 4
    %v51 = vadd.f32 %v49, %v50
    %v52 = vrot.slane %v51, 2
    %v53 = vadd.f32 %v51, %v52
    %v54 = vrot.slane %v53, 1
    %v55 = vadd.f32 %v53, %v54
    %s56 = vtos %v55
    %v57 = vstv %s56
    %58 = vst [vmem:[#allocation2] sm:$0x1] %v57
    // Predicated region
    $region10: #{tpu_custom_call.1} parent=1 // pred_check
      _
    $region11: #{tpu_custom_call.1} parent=1 // pred_check_branch
      %60 = sbr.rel (0) target = $region13
    $region12: #{tpu_custom_call.1} parent=1 // pred_region
      %s62 = ssub.s32 16, 16
      %63 = vsyncadd [#allocation3], %s62
      %s65 = sshll.u32 [#allocation2], 4
      %s66 = int_to_ptr.vmem [resolvable:$true] %s65
      %68 = dma.vmem_to_hbm [thread:$0]  %s66, 16, %s2, [#allocation3]
    $region13: #{tpu_custom_call.1} parent=1 // pred_fallthru
      _
    // Predicated region
    $region14: #{tpu_custom_call.1} parent=1 // pred_check
      _
    $region15: #{tpu_custom_call.1} parent=1 // pred_check_branch
      %70 = sbr.rel (0) target = $region17
    $region16: #{tpu_custom_call.1} parent=1 // pred_region
      %71 = dma.done [#allocation3], 16
    $region17: #{tpu_custom_call.1} parent=1 // pred_fallthru
      _
    %72 = vsyncpa [#allocation3], 1

</llo_original>
